<compile_context>
chip_gen: v6e
topology: v6e:2x2x1
jax: 0.10.0
libtpu: 0.0.40
codegen_flags: <defaults>
</compile_context>

<pallas_src>
import jax
import jax.numpy as jnp
from jax.experimental import pallas as pl
from jax.experimental.pallas import tpu as pltpu

NUM_CLASSES = 10
CLS_PAD = 128        # lane-dense output width (multiple of 128)
FEAT = 784
HIDDEN = 256
NEG_BIG = -1e30      # finite "minus infinity" baked into padded b2 lanes


def mlp_kernel(x_ref, w1_ref, b1_ref, w2_ref, b2_ref, o_ref):
    # hidden = sigmoid(x @ W1 + b1): bf16 at the MXU boundary, f32 accumulation,
    # f32 elementwise math (v5e-safe: its VPU/EUP have no bf16).
    xb = x_ref[...].astype(jnp.bfloat16)
    h = jnp.dot(xb, w1_ref[...], preferred_element_type=jnp.float32)
    h = jax.nn.sigmoid(h + b1_ref[...])          # b1 is (1, 256) f32, broadcasts

    # logits = h @ W2 + b2. Padded W2 columns are zero and padded b2 lanes are
    # -1e30, so padded class lanes vanish in the softmax without an extra mask.
    logits = jnp.dot(h.astype(jnp.bfloat16), w2_ref[...],
                     preferred_element_type=jnp.float32)
    logits = logits + b2_ref[...]                # b2 is (1, 128) f32

    # Numerically stable softmax over dim=1 (classes); exact division so each
    # row sums to 1 to f32 precision.
    m = jnp.max(logits, axis=1, keepdims=True)
    e = jnp.exp(logits - m)
    denom = jnp.sum(e, axis=1, keepdims=True)
    o_ref[...] = (e / denom).astype(o_ref.dtype)


def pack_params(w1_pt, b1, w2_pt, b2):
    """One-time packing of PyTorch-layout parameters (do this outside the hot loop).

    w1_pt: [256, 784]  b1: [256]  w2_pt: [10, 256]  b2: [10]
    Returns (w1, b1_2d, w2, b2_2d) ready for network_forward.
    """
    w1 = jnp.asarray(w1_pt).T.astype(jnp.bfloat16)                    # (784, 256)
    w2 = jnp.zeros((HIDDEN, CLS_PAD), jnp.bfloat16).at[:, :NUM_CLASSES].set(
        jnp.asarray(w2_pt).T.astype(jnp.bfloat16))                    # (256, 128)
    b1_2d = jnp.asarray(b1).reshape(1, HIDDEN).astype(jnp.float32)
    b2_2d = jnp.full((1, CLS_PAD), NEG_BIG, jnp.float32).at[0, :NUM_CLASSES].set(
        jnp.asarray(b2).astype(jnp.float32))
    return w1, b1_2d, w2, b2_2d


def network_forward(x, packed_params, *, tb=None):
    """softmax(sigmoid(x @ W1 + b1) @ W2 + b2): x [B, 784] f32 -> [B, 10] f32."""
    w1, b1_2d, w2, b2_2d = packed_params
    B = x.shape[0]

    # Tile selection: single grid step for small batches (no per-step pipeline
    # overhead); 1024-row tiles otherwise.
    if tb is None:
        tb = B if B <= 4096 else 1024
    n_tiles = pl.cdiv(B, tb)
    Bp = n_tiles * tb

    x_in = x.astype(jnp.float32)
    if Bp != B:
        # Only the ragged-batch case pays a pad pass; no feature pad, no cast.
        x_in = jnp.zeros((Bp, FEAT), jnp.float32).at[:B].set(x_in)

    out_padded = pl.pallas_call(
        mlp_kernel,
        out_shape=jax.ShapeDtypeStruct((Bp, CLS_PAD), jnp.float32),
        grid_spec=pl.GridSpec(
            grid=(n_tiles,),
            in_specs=[
                # x: streamed over batch; last dim 784 == full array dim (legal).
                pl.BlockSpec((tb, FEAT), lambda i: (i, 0)),
                # weights / biases: constant block -> fetched once, stay resident.
                pl.BlockSpec((FEAT, HIDDEN), lambda i: (0, 0)),
                pl.BlockSpec((1, HIDDEN), lambda i: (0, 0)),
                pl.BlockSpec((HIDDEN, CLS_PAD), lambda i: (0, 0)),
                pl.BlockSpec((1, CLS_PAD), lambda i: (0, 0)),
            ],
            out_specs=pl.BlockSpec((tb, CLS_PAD), lambda i: (i, 0)),
        ),
        compiler_params=pltpu.CompilerParams(
            dimension_semantics=("parallel",),   # batch tiles shard across TCs (v7x)
        ),
    )(x_in, w1, b1_2d, w2, b2_2d)

    return out_padded[:B, :NUM_CLASSES]


if __name__ == "__main__":
    key = jax.random.PRNGKey(0)
    k_x, k_w1, k_b1, k_w2, k_b2 = jax.random.split(key, 5)

    B = 32  # small demo batch -> single-grid-step fast path
    w1_pt = jax.random.normal(k_w1, (256, 784), jnp.float32) * 0.03
    b1 = jax.random.normal(k_b1, (256,), jnp.float32) * 0.01
    w2_pt = jax.random.normal(k_w2, (10, 256), jnp.float32) * 0.05
    b2 = jax.random.normal(k_b2, (10,), jnp.float32) * 0.01
    x = jax.random.normal(k_x, (B, 784), jnp.float32)

    packed = pack_params(w1_pt, b1, w2_pt, b2)   # one-time packing
    out = network_forward(x, packed)
    out = jax.block_until_ready(out)

    # Reference in plain f32 JAX (same math as the PyTorch forward).
    h_ref = jax.nn.sigmoid(x @ w1_pt.T + b1)
    ref = jax.nn.softmax(h_ref @ w2_pt.T + b2, axis=1)

    assert out.shape == (B, NUM_CLASSES)
    # bf16 matmul inputs -> looser elementwise tolerance than pure f32.
    assert jnp.allclose(out, ref, atol=1e-2, rtol=1e-2), (
        float(jnp.max(jnp.abs(out - ref))))
    # Exact softmax normalization now (no approx reciprocal).
    assert jnp.allclose(jnp.sum(out, axis=1), 1.0, atol=1e-5), (
        float(jnp.max(jnp.abs(jnp.sum(out, axis=1) - 1.0))))

    print("KERNEL_OK")
</pallas_src>

<mosaic_0001>
module attributes {stable_mosaic.version = 11 : i64} {
  func.func @mlp_kernel(%arg0: i32, %arg1: memref<32x784xf32, #tpu.memory_space<vmem>>, %arg2: memref<784x256xbf16, #tpu.memory_space<vmem>>, %arg3: memref<1x256xf32, #tpu.memory_space<vmem>>, %arg4: memref<256x128xbf16, #tpu.memory_space<vmem>>, %arg5: memref<1x128xf32, #tpu.memory_space<vmem>>, %arg6: memref<32x128xf32, #tpu.memory_space<vmem>>) attributes {dimension_semantics = [#tpu.dimension_semantics<parallel>], iteration_bounds = array<i64: 1>, scalar_prefetch = 0 : i64, scratch_operands = 0 : i64, tpu.core_type = #tpu.core_type<tc>, window_params = [{transform_indices = @transform_0, window_bounds = array<i64: 32, 784>}, {pipeline_mode = #tpu.pipeline_mode<synchronous>, transform_indices = @transform_1, window_bounds = array<i64: 784, 256>}, {pipeline_mode = #tpu.pipeline_mode<synchronous>, transform_indices = @transform_2, window_bounds = array<i64: 1, 256>}, {pipeline_mode = #tpu.pipeline_mode<synchronous>, transform_indices = @transform_3, window_bounds = array<i64: 256, 128>}, {pipeline_mode = #tpu.pipeline_mode<synchronous>, transform_indices = @transform_4, window_bounds = array<i64: 1, 128>}, {transform_indices = @transform_5, window_bounds = array<i64: 32, 128>}]} {
    %c0 = arith.constant 0 : index
    %c0_0 = arith.constant 0 : index
    %0 = vector.load %arg1[%c0, %c0_0] : memref<32x784xf32, #tpu.memory_space<vmem>>, vector<32x784xf32>
    %1 = arith.truncf %0 : vector<32x784xf32> to vector<32x784xbf16>
    %c0_1 = arith.constant 0 : index
    %c0_2 = arith.constant 0 : index
    %2 = vector.load %arg2[%c0_1, %c0_2] : memref<784x256xbf16, #tpu.memory_space<vmem>>, vector<784x256xbf16>
    %cst = arith.constant dense<0.000000e+00> : vector<32x256xf32>
    %3 = tpu.matmul %1, %2, %cst {dimension_numbers = #tpu.dot_dimension_numbers<[1], [0], [0], [1], [0, 0, 1, 1], [], []>} : vector<32x784xbf16>, vector<784x256xbf16>, vector<32x256xf32> -> vector<32x256xf32>
    %c0_3 = arith.constant 0 : index
    %c0_4 = arith.constant 0 : index
    %4 = vector.load %arg3[%c0_3, %c0_4] : memref<1x256xf32, #tpu.memory_space<vmem>>, vector<1x256xf32>
    %5 = vector.broadcast %4 : vector<1x256xf32> to vector<32x256xf32>
    %6 = arith.addf %3, %5 : vector<32x256xf32>
    %7 = arith.negf %6 : vector<32x256xf32>
    %8 = math.exp %7 : vector<32x256xf32>
    %cst_5 = arith.constant 1.000000e+00 : f32
    %9 = vector.broadcast %cst_5 : f32 to vector<32x256xf32>
    %10 = arith.addf %9, %8 : vector<32x256xf32>
    %11 = arith.divf %9, %10 : vector<32x256xf32>
    %12 = arith.truncf %11 : vector<32x256xf32> to vector<32x256xbf16>
    %c0_6 = arith.constant 0 : index
    %c0_7 = arith.constant 0 : index
    %13 = vector.load %arg4[%c0_6, %c0_7] : memref<256x128xbf16, #tpu.memory_space<vmem>>, vector<256x128xbf16>
    %cst_8 = arith.constant dense<0.000000e+00> : vector<32x128xf32>
    %14 = tpu.matmul %12, %13, %cst_8 {dimension_numbers = #tpu.dot_dimension_numbers<[1], [0], [0], [1], [0, 0, 1, 1], [], []>} : vector<32x256xbf16>, vector<256x128xbf16>, vector<32x128xf32> -> vector<32x128xf32>
    %c0_9 = arith.constant 0 : index
    %c0_10 = arith.constant 0 : index
    %15 = vector.load %arg5[%c0_9, %c0_10] : memref<1x128xf32, #tpu.memory_space<vmem>>, vector<1x128xf32>
    %16 = vector.broadcast %15 : vector<1x128xf32> to vector<32x128xf32>
    %17 = arith.addf %14, %16 : vector<32x128xf32>
    %cst_11 = arith.constant dense<0xFF800000> : vector<32xf32>
    %18 = vector.multi_reduction <maximumf>, %17, %cst_11 [1] : vector<32x128xf32> to vector<32xf32>
    %19 = vector.shape_cast %18 : vector<32xf32> to vector<32x1xf32>
    %20 = vector.broadcast %19 : vector<32x1xf32> to vector<32x128xf32>
    %21 = arith.subf %17, %20 : vector<32x128xf32>
    %22 = math.exp %21 : vector<32x128xf32>
    %cst_12 = arith.constant dense<0.000000e+00> : vector<32xf32>
    %23 = vector.multi_reduction <add>, %22, %cst_12 [1] : vector<32x128xf32> to vector<32xf32>
    %24 = vector.shape_cast %23 : vector<32xf32> to vector<32x1xf32>
    %25 = vector.broadcast %24 : vector<32x1xf32> to vector<32x128xf32>
    %26 = arith.divf %22, %25 : vector<32x128xf32>
    %c0_13 = arith.constant 0 : index
    %c0_14 = arith.constant 0 : index
    %27 = vector.load %arg6[%c0_13, %c0_14] : memref<32x128xf32, #tpu.memory_space<vmem>>, vector<32x128xf32>
    tpu.vector_store %arg6[%c0_13, %c0_14], %26 {strides = array<i32>} : memref<32x128xf32, #tpu.memory_space<vmem>>, vector<32x128xf32>,
    return
  }
  func.func @transform_0(%arg0: i32) -> (i32, i32) {
    %c0_i32 = arith.constant 0 : i32
    %c0_i32_0 = arith.constant 0 : i32
    return %arg0, %c0_i32 : i32, i32
  }
  func.func @transform_1(%arg0: i32) -> (i32, i32) {
    %c0_i32 = arith.constant 0 : i32
    %c0_i32_0 = arith.constant 0 : i32
    %c0_i32_1 = arith.constant 0 : i32
    return %c0_i32, %c0_i32_0 : i32, i32
  }
  func.func @transform_2(%arg0: i32) -> (i32, i32) {
    %c0_i32 = arith.constant 0 : i32
    %c0_i32_0 = arith.constant 0 : i32
    %c0_i32_1 = arith.constant 0 : i32
    return %c0_i32, %c0_i32_0 : i32, i32
  }
  func.func @transform_3(%arg0: i32) -> (i32, i32) {
    %c0_i32 = arith.constant 0 : i32
    %c0_i32_0 = arith.constant 0 : i32
    %c0_i32_1 = arith.constant 0 : i32
    return %c0_i32, %c0_i32_0 : i32, i32
  }
  func.func @transform_4(%arg0: i32) -> (i32, i32) {
    %c0_i32 = arith.constant 0 : i32
    %c0_i32_0 = arith.constant 0 : i32
    %c0_i32_1 = arith.constant 0 : i32
    return %c0_i32, %c0_i32_0 : i32, i32
  }
  func.func @transform_5(%arg0: i32) -> (i32, i32) {
    %c0_i32 = arith.constant 0 : i32
    %c0_i32_0 = arith.constant 0 : i32
    return %arg0, %c0_i32 : i32, i32
  }
}

</mosaic_0001>

<llo_original>
// kernel: tpu_custom_call.1
$region0: #{tpu_custom_call.1}
  #allocation0 [shape = 'u32[]', space=smem, size = 0x4, offset = 0x4, fixed_abs, tag = 'smem constant byte address 0x4 - core index']
  #allocation1 [shape = 'u32[144,128]{1,0:T(1,128)}', space=vmem, size = 0x12000, scoped, tag = 'internal scratch']
  %s0 = inlined_call_operand.hbm [shape: f32[32,784], index: 0, kind: input, shape index: {}]
  %s1 = inlined_call_operand.hbm [shape: bf16[784,256], index: 1, kind: input, shape index: {}]
  %s2 = inlined_call_operand.vmem [shape: f32[1,256], index: 2, kind: input, shape index: {}]
  %s3 = inlined_call_operand.hbm [shape: bf16[256,128], index: 3, kind: input, shape index: {}]
  %s4 = inlined_call_operand.vmem [shape: f32[1,128], index: 4, kind: input, shape index: {}]
  %s5 = inlined_call_operand.hbm [shape: f32[32,128], index: 5, kind: output, shape index: {}]
  %s6 = sld [smem:[#allocation0]]
  $region42: #{tpu_custom_call.1} parent=0
    _
  %s8 = ssub.s32 1, %s6
  %s9 = scalar_select 0, %s8, %s6
  $region1: #{tpu_custom_call.1} parent=0
    #allocation2 [shape = 'u8[114688]{0}', space=vmem, size = 0x1c000, scoped, tag = 'input window, operand 0, single buffered']
    #allocation3 [shape = 's32[1]{0}', space=sflag, size = 0x4, scoped, tag = 'scoped memory for tpu_custom_call.1']
    #allocation4 [shape = 's32[1]{0}', space=sflag, size = 0x4, scoped, tag = 'scoped memory for tpu_custom_call.1']
    #allocation5 [shape = 'u8[401408]{0}', space=vmem, size = 0x62000, scoped, tag = 'input window, operand 1, single buffered']
    #allocation6 [shape = 's32[1]{0}', space=sflag, size = 0x4, scoped, tag = 'scoped memory for tpu_custom_call.1']
    #allocation7 [shape = 'u8[65536]{0}', space=vmem, size = 0x10000, scoped, tag = 'input window, operand 3, single buffered']
    #allocation8 [shape = 'u8[16384]{0}', space=vmem, size = 0x4000, scoped, tag = 'output window, operand 0, single buffered']
    %10 = vsyncpa [#allocation3], 0
    %11 = vsyncpa [#allocation6], 0
    %12 = vsyncpa [#allocation4], 0
    // Predicated region
    $region2: #{tpu_custom_call.1} parent=1 // pred_check
      _
    $region3: #{tpu_custom_call.1} parent=1 // pred_check_branch
      %14 = sbr.rel (0) target = $region5
    $region4: #{tpu_custom_call.1} parent=1 // pred_region
      %s16 = ssub.s32 3584, 3584
      %17 = vsyncadd [#allocation3], %s16
      %s18 = sshll.u32 [#allocation2], 4
      %s19 = int_to_ptr.vmem [resolvable:$true] %s18
      %24 = dma.hbm_to_vmem [thread:$0]  %s0, 3584, %s19, [#allocation3], 896, 896, 56
    $region5: #{tpu_custom_call.1} parent=1 // pred_fallthru
      _
    // Predicated region
    $region6: #{tpu_custom_call.1} parent=1 // pred_check
      _
    $region7: #{tpu_custom_call.1} parent=1 // pred_check_branch
      %26 = sbr.rel (0) target = $region9
    $region8: #{tpu_custom_call.1} parent=1 // pred_region
      %s28 = ssub.s32 12544, 12544
      %29 = vsyncadd [#allocation6], %s28
      %s30 = sshll.u32 [#allocation5], 4
      %s31 = int_to_ptr.vmem [resolvable:$true] %s30
      %36 = dma.hbm_to_vmem [thread:$0]  %s1, 12544, %s31, [#allocation6], 128, 128, 8
    $region9: #{tpu_custom_call.1} parent=1 // pred_fallthru
      _
    // Predicated region
    $region10: #{tpu_custom_call.1} parent=1 // pred_check
      _
    $region11: #{tpu_custom_call.1} parent=1 // pred_check_branch
      %38 = sbr.rel (0) target = $region13
    $region12: #{tpu_custom_call.1} parent=1 // pred_region
      _
    $region13: #{tpu_custom_call.1} parent=1 // pred_fallthru
      _
    // Predicated region
    $region14: #{tpu_custom_call.1} parent=1 // pred_check
      _
    $region15: #{tpu_custom_call.1} parent=1 // pred_check_branch
      %40 = sbr.rel (0) target = $region17
    $region16: #{tpu_custom_call.1} parent=1 // pred_region
      %s42 = ssub.s32 2048, 2048
      %43 = vsyncadd [#allocation6], %s42
      %s44 = sshll.u32 [#allocation7], 4
      %s45 = int_to_ptr.vmem [resolvable:$true] %s44
      %50 = dma.hbm_to_vmem [thread:$0]  %s3, 2048, %s45, [#allocation6], 64, 64, 4
    $region17: #{tpu_custom_call.1} parent=1 // pred_fallthru
      _
    // Predicated region
    $region18: #{tpu_custom_call.1} parent=1 // pred_check
      _
    $region19: #{tpu_custom_call.1} parent=1 // pred_check_branch
      %52 = sbr.rel (0) target = $region21
    $region20: #{tpu_custom_call.1} parent=1 // pred_region
      _
    $region21: #{tpu_custom_call.1} parent=1 // pred_fallthru
      _
    // Predicated region
    $region22: #{tpu_custom_call.1} parent=1 // pred_check
      _
    $region23: #{tpu_custom_call.1} parent=1 // pred_check_branch
      %54 = sbr.rel (0) target = $region25
    $region24: #{tpu_custom_call.1} parent=1 // pred_region
      %55 = dma.done [#allocation3], 3584
    $region25: #{tpu_custom_call.1} parent=1 // pred_fallthru
      _
    // Predicated region
    $region26: #{tpu_custom_call.1} parent=1 // pred_check
      _
    $region27: #{tpu_custom_call.1} parent=1 // pred_check_branch
      %57 = sbr.rel (0) target = $region29
    $region28: #{tpu_custom_call.1} parent=1 // pred_region
      %58 = dma.done [#allocation6], 12544
    $region29: #{tpu_custom_call.1} parent=1 // pred_fallthru
      _
    // Predicated region
    $region30: #{tpu_custom_call.1} parent=1 // pred_check
      _
    $region31: #{tpu_custom_call.1} parent=1 // pred_check_branch
      %60 = sbr.rel (0) target = $region33
    $region32: #{tpu_custom_call.1} parent=1 // pred_region
      %61 = dma.done [#allocation6], 2048
    $region33: #{tpu_custom_call.1} parent=1 // pred_fallthru
      _
    %v63 = vld [vmem:[#allocation2] sm:$0xff]
    %v64 = vld [vmem:[#allocation2 + $0x8] sm:$0xff]
    %v65 = vld [vmem:[#allocation2 + $0x10] sm:$0xff]
    %v66 = vld [vmem:[#allocation2 + $0x18] sm:$0xff]
    %v67 = vld [vmem:[#allocation2 + $0x20] sm:$0xff]
    %v68 = vld [vmem:[#allocation2 + $0x28] sm:$0xff]
    %v69 = vld [vmem:[#allocation2 + $0x30] sm:$0xff]
    %v70 = vld [vmem:[#allocation2 + $0x38] sm:$0xff]
    %v71 = vld [vmem:[#allocation2 + $0x40] sm:$0xff]
    %v72 = vld [vmem:[#allocation2 + $0x48] sm:$0xff]
    %v73 = vld [vmem:[#allocation2 + $0x50] sm:$0xff]
    %v74 = vld [vmem:[#allocation2 + $0x58] sm:$0xff]
    %v75 = vld [vmem:[#allocation2 + $0x60] sm:$0xff]
    %v76 = vld [vmem:[#allocation2 + $0x68] sm:$0xff]
    %v77 = vld [vmem:[#allocation2 + $0x70] sm:$0xff]
    %v78 = vld [vmem:[#allocation2 + $0x78] sm:$0xff]
    %v79 = vld [vmem:[#allocation2 + $0x80] sm:$0xff]
    %v80 = vld [vmem:[#allocation2 + $0x88] sm:$0xff]
    %v81 = vld [vmem:[#allocation2 + $0x90] sm:$0xff]
    %v82 = vld [vmem:[#allocation2 + $0x98] sm:$0xff]
    %v83 = vld [vmem:[#allocation2 + $0xa0] sm:$0xff]
    %v84 = vld [vmem:[#allocation2 + $0xa8] sm:$0xff]
    %v85 = vld [vmem:[#allocation2 + $0xb0] sm:$0xff]
    %v86 = vld [vmem:[#allocation2 + $0xb8] sm:$0xff]
    %v87 = vld [vmem:[#allocation2 + $0xc0] sm:$0xff]
    %v88 = vld [vmem:[#allocation2 + $0xc8] sm:$0xff]
    %v89 = vld [vmem:[#allocation2 + $0xd0] sm:$0xff]
    %v90 = vld [vmem:[#allocation2 + $0xd8] sm:$0xff]
    %v91 = vpack.c.bf16 %v70, %v63
    %v92 = vpack.c.bf16 %v71, %v64
    %v93 = vpack.c.bf16 %v72, %v65
    %v94 = vpack.c.bf16 %v73, %v66
    %v95 = vpack.c.bf16 %v74, %v67
    %v96 = vpack.c.bf16 %v75, %v68
    %v97 = vpack.c.bf16 %v76, %v69
    %v98 = vpack.c.bf16 %v84, %v77
    %v99 = vpack.c.bf16 %v85, %v78
    %v100 = vpack.c.bf16 %v86, %v79
    %v101 = vpack.c.bf16 %v87, %v80
    %v102 = vpack.c.bf16 %v88, %v81
    %v103 = vpack.c.bf16 %v89, %v82
    %v104 = vpack.c.bf16 %v90, %v83
    %v105 = vld [vmem:[#allocation5] sm:$0xff]
    %v106 = vld [vmem:[#allocation5 + $0x8] sm:$0xff]
    %v107 = vld [vmem:[#allocation5 + $0x10] sm:$0xff]
    %v108 = vld [vmem:[#allocation5 + $0x18] sm:$0xff]
    %v109 = vld [vmem:[#allocation5 + $0x20] sm:$0xff]
    %v110 = vld [vmem:[#allocation5 + $0x28] sm:$0xff]
    %v111 = vld [vmem:[#allocation5 + $0x30] sm:$0xff]
    %v112 = vld [vmem:[#allocation5 + $0x38] sm:$0xff]
    %v113 = vld [vmem:[#allocation5 + $0x40] sm:$0xff]
    %v114 = vld [vmem:[#allocation5 + $0x48] sm:$0xff]
    %v115 = vld [vmem:[#allocation5 + $0x50] sm:$0xff]
    %v116 = vld [vmem:[#allocation5 + $0x58] sm:$0xff]
    %v117 = vld [vmem:[#allocation5 + $0x60] sm:$0xff]
    %v118 = vld [vmem:[#allocation5 + $0x68] sm:$0xff]
    %v119 = vld [vmem:[#allocation5 + $0x70] sm:$0xff]
    %v120 = vld [vmem:[#allocation5 + $0x78] sm:$0xff]
    %v121 = vld [vmem:[#allocation5 + $0x80] sm:$0xff]
    %v122 = vld [vmem:[#allocation5 + $0x88] sm:$0xff]
    %v123 = vld [vmem:[#allocation5 + $0x90] sm:$0xff]
    %v124 = vld [vmem:[#allocation5 + $0x98] sm:$0xff]
    %v125 = vld [vmem:[#allocation5 + $0xa0] sm:$0xff]
    %v126 = vld [vmem:[#allocation5 + $0xa8] sm:$0xff]
    %v127 = vld [vmem:[#allocation5 + $0xb0] sm:$0xff]
    %v128 = vld [vmem:[#allocation5 + $0xb8] sm:$0xff]
    %v129 = vld [vmem:[#allocation5 + $0xc0] sm:$0xff]
    %v130 = vld [vmem:[#allocation5 + $0xc8] sm:$0xff]
    %v131 = vld [vmem:[#allocation5 + $0xd0] sm:$0xff]
    %v132 = vld [vmem:[#allocation5 + $0xd8] sm:$0xff]
    %v133 = vld [vmem:[#allocation5 + $0xe0] sm:$0xff]
    %v134 = vld [vmem:[#allocation5 + $0xe8] sm:$0xff]
    %v135 = vld [vmem:[#allocation5 + $0xf0] sm:$0xff]
    %v136 = vld [vmem:[#allocation5 + $0xf8] sm:$0xff]
    %v137 = vld [vmem:[#allocation5 + $0x100] sm:$0xff]
    %v138 = vld [vmem:[#allocation5 + $0x108] sm:$0xff]
    %v139 = vld [vmem:[#allocation5 + $0x110] sm:$0xff]
    %v140 = vld [vmem:[#allocation5 + $0x118] sm:$0xff]
    %v141 = vld [vmem:[#allocation5 + $0x120] sm:$0xff]
    %v142 = vld [vmem:[#allocation5 + $0x128] sm:$0xff]
    %v143 = vld [vmem:[#allocation5 + $0x130] sm:$0xff]
    %v144 = vld [vmem:[#allocation5 + $0x138] sm:$0xff]
    %v145 = vld [vmem:[#allocation5 + $0x140] sm:$0xff]
    %v146 = vld [vmem:[#allocation5 + $0x148] sm:$0xff]
    %v147 = vld [vmem:[#allocation5 + $0x150] sm:$0xff]
    %v148 = vld [vmem:[#allocation5 + $0x158] sm:$0xff]
    %v149 = vld [vmem:[#allocation5 + $0x160] sm:$0xff]
    %v150 = vld [vmem:[#allocation5 + $0x168] sm:$0xff]
    %v151 = vld [vmem:[#allocation5 + $0x170] sm:$0xff]
    %v152 = vld [vmem:[#allocation5 + $0x178] sm:$0xff]
    %v153 = vld [vmem:[#allocation5 + $0x180] sm:$0xff]
    %v154 = vld [vmem:[#allocation5 + $0x188] sm:$0xff]
    %v155 = vld [vmem:[#allocation5 + $0x190] sm:$0xff]
    %v156 = vld [vmem:[#allocation5 + $0x198] sm:$0xff]
    %v157 = vld [vmem:[#allocation5 + $0x1a0] sm:$0xff]
    %v158 = vld [vmem:[#allocation5 + $0x1a8] sm:$0xff]
    %v159 = vld [vmem:[#allocation5 + $0x1b0] sm:$0xff]
    %v160 = vld [vmem:[#allocation5 + $0x1b8] sm:$0xff]
    %v161 = vld [vmem:[#allocation5 + $0x1c0] sm:$0xff]
    %v162 = vld [vmem:[#allocation5 + $0x1c8] sm:$0xff]
    %v163 = vld [vmem:[#allocation5 + $0x1d0] sm:$0xff]
    %v164 = vld [vmem:[#allocation5 + $0x1d8] sm:$0xff]
    %v165 = vld [vmem:[#allocation5 + $0x1e0] sm:$0xff]
    %v166 = vld [vmem:[#allocation5 + $0x1e8] sm:$0xff]
    %v167 = vld [vmem:[#allocation5 + $0x1f0] sm:$0xff]
    %v168 = vld [vmem:[#allocation5 + $0x1f8] sm:$0xff]
    %v169 = vld [vmem:[#allocation5 + $0x200] sm:$0xff]
    %v170 = vld [vmem:[#allocation5 + $0x208] sm:$0xff]
    %v171 = vld [vmem:[#allocation5 + $0x210] sm:$0xff]
    %v172 = vld [vmem:[#allocation5 + $0x218] sm:$0xff]
    %v173 = vld [vmem:[#allocation5 + $0x220] sm:$0xff]
    %v174 = vld [vmem:[#allocation5 + $0x228] sm:$0xff]
    %v175 = vld [vmem:[#allocation5 + $0x230] sm:$0xff]
    %v176 = vld [vmem:[#allocation5 + $0x238] sm:$0xff]
    %v177 = vld [vmem:[#allocation5 + $0x240] sm:$0xff]
    %v178 = vld [vmem:[#allocation5 + $0x248] sm:$0xff]
    %v179 = vld [vmem:[#allocation5 + $0x250] sm:$0xff]
    %v180 = vld [vmem:[#allocation5 + $0x258] sm:$0xff]
    %v181 = vld [vmem:[#allocation5 + $0x260] sm:$0xff]
    %v182 = vld [vmem:[#allocation5 + $0x268] sm:$0xff]
    %v183 = vld [vmem:[#allocation5 + $0x270] sm:$0xff]
    %v184 = vld [vmem:[#allocation5 + $0x278] sm:$0xff]
    %v185 = vld [vmem:[#allocation5 + $0x280] sm:$0xff]
    %v186 = vld [vmem:[#allocation5 + $0x288] sm:$0xff]
    %v187 = vld [vmem:[#allocation5 + $0x290] sm:$0xff]
    %v188 = vld [vmem:[#allocation5 + $0x298] sm:$0xff]
    %v189 = vld [vmem:[#allocation5 + $0x2a0] sm:$0xff]
    %v190 = vld [vmem:[#allocation5 + $0x2a8] sm:$0xff]
    %v191 = vld [vmem:[#allocation5 + $0x2b0] sm:$0xff]
    %v192 = vld [vmem:[#allocation5 + $0x2b8] sm:$0xff]
    %v193 = vld [vmem:[#allocation5 + $0x2c0] sm:$0xff]
    %v194 = vld [vmem:[#allocation5 + $0x2c8] sm:$0xff]
    %v195 = vld [vmem:[#allocation5 + $0x2d0] sm:$0xff]
    %v196 = vld [vmem:[#allocation5 + $0x2d8] sm:$0xff]
    %v197 = vld [vmem:[#allocation5 + $0x2e0] sm:$0xff]
    %v198 = vld [vmem:[#allocation5 + $0x2e8] sm:$0xff]
    %v199 = vld [vmem:[#allocation5 + $0x2f0] sm:$0xff]
    %v200 = vld [vmem:[#allocation5 + $0x2f8] sm:$0xff]
    %v201 = vld [vmem:[#allocation5 + $0x300] sm:$0xff]
    %v202 = vld [vmem:[#allocation5 + $0x308] sm:$0xff]
    %v203 = vld [vmem:[%s2] sm:$0x3]
    %v205 = vlaneseq
    %v206 = vshrl.u32 %v205, 7
    %v207 = vsub.s32 0, %v206
    %v208 = vrot.slane %v203, %v207
    %v209 = vlaneseq
    %v210 = vshrl.u32 %v209, 7
    %v211 = vsub.s32 1, %v210
    %v212 = vrot.slane %v203, %v211
    %v313 = vunpack.c.l.b16 %v105
    %v314 = vunpack.c.h.b16 %v105
    %v315 = vunpack.c.l.b16 %v106
    %v316 = vunpack.c.h.b16 %v106
    %v317 = vunpack.c.l.b16 %v107
    %v318 = vunpack.c.h.b16 %v107
    %v319 = vunpack.c.l.b16 %v108
    %v320 = vunpack.c.h.b16 %v108
    %v321 = vunpack.c.l.b16 %v109
    %v322 = vunpack.c.h.b16 %v109
    %v323 = vunpack.c.l.b16 %v110
    %v324 = vunpack.c.h.b16 %v110
    %v325 = vunpack.c.l.b16 %v111
    %v326 = vunpack.c.h.b16 %v111
    %v327 = vunpack.c.l.b16 %v112
    %v328 = vunpack.c.h.b16 %v112
    %v329 = vunpack.c.l.b16 %v113
    %v330 = vunpack.c.h.b16 %v113
    %v331 = vunpack.c.l.b16 %v114
    %v332 = vunpack.c.h.b16 %v114
    %v333 = vunpack.c.l.b16 %v115
    %v334 = vunpack.c.h.b16 %v115
    %v335 = vunpack.c.l.b16 %v116
    %v336 = vunpack.c.h.b16 %v116
    %v337 = vunpack.c.l.b16 %v117
    %v338 = vunpack.c.h.b16 %v117
    %v339 = vunpack.c.l.b16 %v118
    %v340 = vunpack.c.h.b16 %v118
    %v341 = vunpack.c.l.b16 %v119
    %v342 = vunpack.c.h.b16 %v119
    %v343 = vunpack.c.l.b16 %v120
    %v344 = vunpack.c.h.b16 %v120
    %v345 = vunpack.c.l.b16 %v121
    %v346 = vunpack.c.h.b16 %v121
    %v347 = vunpack.c.l.b16 %v122
    %v348 = vunpack.c.h.b16 %v122
    %v349 = vunpack.c.l.b16 %v123
    %v350 = vunpack.c.h.b16 %v123
    %v351 = vunpack.c.l.b16 %v124
    %v352 = vunpack.c.h.b16 %v124
    %v353 = vunpack.c.l.b16 %v125
    %v354 = vunpack.c.h.b16 %v125
    %v355 = vunpack.c.l.b16 %v126
    %v356 = vunpack.c.h.b16 %v126
    %v357 = vunpack.c.l.b16 %v127
    %v358 = vunpack.c.h.b16 %v127
    %v359 = vunpack.c.l.b16 %v128
    %v360 = vunpack.c.h.b16 %v128
    %v361 = vunpack.c.l.b16 %v129
    %v362 = vunpack.c.h.b16 %v129
    %v363 = vunpack.c.l.b16 %v130
    %v364 = vunpack.c.h.b16 %v130
    %v365 = vunpack.c.l.b16 %v131
    %v366 = vunpack.c.h.b16 %v131
    %v367 = vunpack.c.l.b16 %v132
    %v368 = vunpack.c.h.b16 %v132
    %v369 = vunpack.c.l.b16 %v133
    %v370 = vunpack.c.h.b16 %v133
    %v371 = vunpack.c.l.b16 %v134
    %v372 = vunpack.c.h.b16 %v134
    %v373 = vunpack.c.l.b16 %v135
    %v374 = vunpack.c.h.b16 %v135
    %v375 = vunpack.c.l.b16 %v136
    %v376 = vunpack.c.h.b16 %v136
    %v377 = vunpack.c.l.b16 %v137
    %v378 = vunpack.c.h.b16 %v137
    %v379 = vunpack.c.l.b16 %v138
    %v380 = vunpack.c.h.b16 %v138
    %v381 = vunpack.c.l.b16 %v139
    %v382 = vunpack.c.h.b16 %v139
    %v383 = vunpack.c.l.b16 %v140
    %v384 = vunpack.c.h.b16 %v140
    %v385 = vunpack.c.l.b16 %v141
    %v386 = vunpack.c.h.b16 %v141
    %v387 = vunpack.c.l.b16 %v142
    %v388 = vunpack.c.h.b16 %v142
    %v389 = vunpack.c.l.b16 %v143
    %v390 = vunpack.c.h.b16 %v143
    %v391 = vunpack.c.l.b16 %v144
    %v392 = vunpack.c.h.b16 %v144
    %v393 = vunpack.c.l.b16 %v145
    %v394 = vunpack.c.h.b16 %v145
    %v395 = vunpack.c.l.b16 %v146
    %v396 = vunpack.c.h.b16 %v146
    %v397 = vunpack.c.l.b16 %v147
    %v398 = vunpack.c.h.b16 %v147
    %v399 = vunpack.c.l.b16 %v148
    %v400 = vunpack.c.h.b16 %v148
    %v401 = vunpack.c.l.b16 %v149
    %v402 = vunpack.c.h.b16 %v149
    %v403 = vunpack.c.l.b16 %v150
    %v404 = vunpack.c.h.b16 %v150
    %v405 = vunpack.c.l.b16 %v151
    %v406 = vunpack.c.h.b16 %v151
    %v407 = vunpack.c.l.b16 %v152
    %v408 = vunpack.c.h.b16 %v152
    %v409 = vunpack.c.l.b16 %v153
    %v410 = vunpack.c.h.b16 %v153
    %v411 = vunpack.c.l.b16 %v154
    %v412 = vunpack.c.h.b16 %v154
    %v413 = vunpack.c.l.b16 %v155
    %v414 = vunpack.c.h.b16 %v155
    %v415 = vunpack.c.l.b16 %v156
    %v416 = vunpack.c.h.b16 %v156
    %v417 = vunpack.c.l.b16 %v157
    %v418 = vunpack.c.h.b16 %v157
    %v419 = vunpack.c.l.b16 %v158
    %v420 = vunpack.c.h.b16 %v158
    %v421 = vunpack.c.l.b16 %v159
    %v422 = vunpack.c.h.b16 %v159
    %v423 = vunpack.c.l.b16 %v160
    %v424 = vunpack.c.h.b16 %v160
    %v425 = vunpack.c.l.b16 %v161
    %v426 = vunpack.c.h.b16 %v161
    %v427 = vunpack.c.l.b16 %v162
    %v428 = vunpack.c.h.b16 %v162
    %v429 = vunpack.c.l.b16 %v163
    %v430 = vunpack.c.h.b16 %v163
    %v431 = vunpack.c.l.b16 %v164
    %v432 = vunpack.c.h.b16 %v164
    %v433 = vunpack.c.l.b16 %v165
    %v434 = vunpack.c.h.b16 %v165
    %v435 = vunpack.c.l.b16 %v166
    %v436 = vunpack.c.h.b16 %v166
    %v437 = vunpack.c.l.b16 %v167
    %v438 = vunpack.c.h.b16 %v167
    %v439 = vunpack.c.l.b16 %v168
    %v440 = vunpack.c.h.b16 %v168
    %v441 = vunpack.c.l.b16 %v169
    %v442 = vunpack.c.h.b16 %v169
    %v443 = vunpack.c.l.b16 %v170
    %v444 = vunpack.c.h.b16 %v170
    %v445 = vunpack.c.l.b16 %v171
    %v446 = vunpack.c.h.b16 %v171
    %v447 = vunpack.c.l.b16 %v172
    %v448 = vunpack.c.h.b16 %v172
    %v449 = vunpack.c.l.b16 %v173
    %v450 = vunpack.c.h.b16 %v173
    %v451 = vunpack.c.l.b16 %v174
    %v452 = vunpack.c.h.b16 %v174
    %v453 = vunpack.c.l.b16 %v175
    %v454 = vunpack.c.h.b16 %v175
    %v455 = vunpack.c.l.b16 %v176
    %v456 = vunpack.c.h.b16 %v176
    %v457 = vunpack.c.l.b16 %v177
    %v458 = vunpack.c.h.b16 %v177
    %v459 = vunpack.c.l.b16 %v178
    %v460 = vunpack.c.h.b16 %v178
    %v461 = vunpack.c.l.b16 %v179
    %v462 = vunpack.c.h.b16 %v179
    %v463 = vunpack.c.l.b16 %v180
    %v464 = vunpack.c.h.b16 %v180
    %v465 = vunpack.c.l.b16 %v181
    %v466 = vunpack.c.h.b16 %v181
    %v467 = vunpack.c.l.b16 %v182
    %v468 = vunpack.c.h.b16 %v182
    %v469 = vunpack.c.l.b16 %v183
    %v470 = vunpack.c.h.b16 %v183
    %v471 = vunpack.c.l.b16 %v184
    %v472 = vunpack.c.h.b16 %v184
    %v473 = vunpack.c.l.b16 %v185
    %v474 = vunpack.c.h.b16 %v185
    %v475 = vunpack.c.l.b16 %v186
    %v476 = vunpack.c.h.b16 %v186
    %v477 = vunpack.c.l.b16 %v187
    %v478 = vunpack.c.h.b16 %v187
    %v479 = vunpack.c.l.b16 %v188
    %v480 = vunpack.c.h.b16 %v188
    %v481 = vunpack.c.l.b16 %v189
    %v482 = vunpack.c.h.b16 %v189
    %v483 = vunpack.c.l.b16 %v190
    %v484 = vunpack.c.h.b16 %v190
    %v485 = vunpack.c.l.b16 %v191
    %v486 = vunpack.c.h.b16 %v191
    %v487 = vunpack.c.l.b16 %v192
    %v488 = vunpack.c.h.b16 %v192
    %v489 = vunpack.c.l.b16 %v193
    %v490 = vunpack.c.h.b16 %v193
    %v491 = vunpack.c.l.b16 %v194
    %v492 = vunpack.c.h.b16 %v194
    %v493 = vunpack.c.l.b16 %v195
    %v494 = vunpack.c.h.b16 %v195
    %v495 = vunpack.c.l.b16 %v196
    %v496 = vunpack.c.h.b16 %v196
    %v497 = vunpack.c.l.b16 %v197
    %v498 = vunpack.c.h.b16 %v197
    %v499 = vunpack.c.l.b16 %v198
    %v500 = vunpack.c.h.b16 %v198
    %v501 = vunpack.c.l.b16 %v199
    %v502 = vunpack.c.h.b16 %v199
    %v503 = vunpack.c.l.b16 %v200
    %v504 = vunpack.c.h.b16 %v200
    %v505 = vunpack.c.l.b16 %v201
    %v506 = vunpack.c.h.b16 %v201
    %v507 = vunpack.c.l.b16 %v202
    %v508 = vunpack.c.h.b16 %v202
    %v509 = vpack.c.b16 %v315, %v313
    %v510 = vpack.c.b16 %v316, %v314
    %v511 = vpack.c.b16 %v319, %v317
    %v512 = vpack.c.b16 %v320, %v318
    %v513 = vpack.c.b16 %v323, %v321
    %v514 = vpack.c.b16 %v324, %v322
    %v515 = vpack.c.b16 %v327, %v325
    %v516 = vpack.c.b16 %v328, %v326
    %v517 = vpack.c.b16 %v331, %v329
    %v518 = vpack.c.b16 %v332, %v330
    %v519 = vpack.c.b16 %v335, %v333
    %v520 = vpack.c.b16 %v336, %v334
    %v521 = vpack.c.b16 %v339, %v337
    %v522 = vpack.c.b16 %v340, %v338
    %v523 = vpack.c.b16 %v343, %v341
    %v524 = vpack.c.b16 %v344, %v342
    %v525 = vpack.c.b16 %v347, %v345
    %v526 = vpack.c.b16 %v348, %v346
    %v527 = vpack.c.b16 %v351, %v349
    %v528 = vpack.c.b16 %v352, %v350
    %v529 = vpack.c.b16 %v355, %v353
    %v530 = vpack.c.b16 %v356, %v354
    %v531 = vpack.c.b16 %v359, %v357
    %v532 = vpack.c.b16 %v360, %v358
    %v533 = vpack.c.b16 %v363, %v361
    %v534 = vpack.c.b16 %v364, %v362
    %v535 = vpack.c.b16 %v367, %v365
    %v536 = vpack.c.b16 %v368, %v366
    %v537 = vpack.c.b16 %v371, %v369
    %v538 = vpack.c.b16 %v372, %v370
    %v539 = vpack.c.b16 %v375, %v373
    %v540 = vpack.c.b16 %v376, %v374
    %v541 = vpack.c.b16 %v379, %v377
    %v542 = vpack.c.b16 %v380, %v378
    %v543 = vpack.c.b16 %v383, %v381
    %v544 = vpack.c.b16 %v384, %v382
    %v545 = vpack.c.b16 %v387, %v385
    %v546 = vpack.c.b16 %v388, %v386
    %v547 = vpack.c.b16 %v391, %v389
    %v548 = vpack.c.b16 %v392, %v390
    %v549 = vpack.c.b16 %v395, %v393
    %v550 = vpack.c.b16 %v396, %v394
    %v551 = vpack.c.b16 %v399, %v397
    %v552 = vpack.c.b16 %v400, %v398
    %v553 = vpack.c.b16 %v403, %v401
    %v554 = vpack.c.b16 %v404, %v402
    %v555 = vpack.c.b16 %v407, %v405
    %v556 = vpack.c.b16 %v408, %v406
    %v557 = vpack.c.b16 %v411, %v409
    %v558 = vpack.c.b16 %v412, %v410
    %v559 = vpack.c.b16 %v415, %v413
    %v560 = vpack.c.b16 %v416, %v414
    %v561 = vpack.c.b16 %v419, %v417
    %v562 = vpack.c.b16 %v420, %v418
    %v563 = vpack.c.b16 %v423, %v421
    %v564 = vpack.c.b16 %v424, %v422
    %v565 = vpack.c.b16 %v427, %v425
    %v566 = vpack.c.b16 %v428, %v426
    %v567 = vpack.c.b16 %v431, %v429
    %v568 = vpack.c.b16 %v432, %v430
    %v569 = vpack.c.b16 %v435, %v433
    %v570 = vpack.c.b16 %v436, %v434
    %v571 = vpack.c.b16 %v439, %v437
    %v572 = vpack.c.b16 %v440, %v438
    %v573 = vpack.c.b16 %v443, %v441
    %v574 = vpack.c.b16 %v444, %v442
    %v575 = vpack.c.b16 %v447, %v445
    %v576 = vpack.c.b16 %v448, %v446
    %v577 = vpack.c.b16 %v451, %v449
    %v578 = vpack.c.b16 %v452, %v450
    %v579 = vpack.c.b16 %v455, %v453
    %v580 = vpack.c.b16 %v456, %v454
    %v581 = vpack.c.b16 %v459, %v457
    %v582 = vpack.c.b16 %v460, %v458
    %v583 = vpack.c.b16 %v463, %v461
    %v584 = vpack.c.b16 %v464, %v462
    %v585 = vpack.c.b16 %v467, %v465
    %v586 = vpack.c.b16 %v468, %v466
    %v587 = vpack.c.b16 %v471, %v469
    %v588 = vpack.c.b16 %v472, %v470
    %v589 = vpack.c.b16 %v475, %v473
    %v590 = vpack.c.b16 %v476, %v474
    %v591 = vpack.c.b16 %v479, %v477
    %v592 = vpack.c.b16 %v480, %v478
    %v593 = vpack.c.b16 %v483, %v481
    %v594 = vpack.c.b16 %v484, %v482
    %v595 = vpack.c.b16 %v487, %v485
    %v596 = vpack.c.b16 %v488, %v486
    %v597 = vpack.c.b16 %v491, %v489
    %v598 = vpack.c.b16 %v492, %v490
    %v599 = vpack.c.b16 %v495, %v493
    %v600 = vpack.c.b16 %v496, %v494
    %v601 = vpack.c.b16 %v499, %v497
    %v602 = vpack.c.b16 %v500, %v498
    %v603 = vpack.c.b16 %v503, %v501
    %v604 = vpack.c.b16 %v504, %v502
    %v605 = vpack.c.b16 %v507, %v505
    %v606 = vpack.c.b16 %v508, %v506
    %vm705 = vcmask 130048
    %v707 = vsel %vm705, %v97, 0
    %v710 = vsel %vm705, %v104, 0
    %712 = vmatprep.subr.bf16.mxu0 %v524
    %713 = vmatpush1.bf16.msra.mxu0 %v523
    %714 = vmatprep.subr.bf16.mxu0 %v522
    %715 = vmatpush1.bf16.msra.mxu0 %v521
    %716 = vmatprep.subr.bf16.mxu0 %v520
    %717 = vmatpush1.bf16.msra.mxu0 %v519
    %718 = vmatprep.subr.bf16.mxu0 %v518
    %719 = vmatpush1.bf16.msra.mxu0 %v517
    %720 = vmatprep.subr.bf16.mxu0 %v516
    %721 = vmatpush1.bf16.msra.mxu0 %v515
    %722 = vmatprep.subr.bf16.mxu0 %v514
    %723 = vmatpush1.bf16.msra.mxu0 %v513
    %724 = vmatprep.subr.bf16.mxu0 %v512
    %725 = vmatpush1.bf16.msra.mxu0 %v511
    %726 = vmatprep.subr.bf16.mxu0 %v510
    %727 = vmatpush1.bf16.msra.mxu0 %v509
    %728 = vmatprep.subr.bf16.mxu0 %v540
    %729 = vmatpush2.bf16.msra.mxu0 %v539
    %730 = vmatprep.subr.bf16.mxu0 %v538
    %731 = vmatpush2.bf16.msra.mxu0 %v537
    %732 = vmatprep.subr.bf16.mxu0 %v536
    %733 = vmatpush2.bf16.msra.mxu0 %v535
    %734 = vmatprep.subr.bf16.mxu0 %v534
    %735 = vmatpush2.bf16.msra.mxu0 %v533
    %736 = vmatprep.subr.bf16.mxu0 %v532
    %737 = vmatpush2.bf16.msra.mxu0 %v531
    %738 = vmatprep.subr.bf16.mxu0 %v530
    %739 = vmatpush2.bf16.msra.mxu0 %v529
    %740 = vmatprep.subr.bf16.mxu0 %v528
    %741 = vmatpush2.bf16.msra.mxu0 %v527
    %742 = vmatprep.subr.bf16.mxu0 %v526
    %743 = vmatpush2.bf16.msra.mxu0 %v525
    %744 = vmatprep.mubr.bf16.mxu0 %v92
    %745 = vmatmul.mubr.bf16.gmra.mxu0 %v91
    %v746 = vpop.f32.mrf.mxu0
    %v747 = vadd.f32 %v208, %v746
    %v748 = vpop.f32.mrf.mxu0
    %v749 = vadd.f32 %v212, %v748
    %v750 = vpop.f32.mrf.mxu0
    %v751 = vadd.f32 %v208, %v750
    %v752 = vpop.f32.mrf.mxu0
    %v753 = vadd.f32 %v212, %v752
    %754 = vmatprep.mubr.bf16.mxu0 %v99
    %755 = vmatmul.mubr.bf16.gmra.mxu0 %v98
    %v756 = vpop.f32.mrf.mxu0
    %v757 = vadd.f32 %v208, %v756
    %v758 = vpop.f32.mrf.mxu0
    %v759 = vadd.f32 %v212, %v758
    %v760 = vpop.f32.mrf.mxu0
    %v761 = vadd.f32 %v208, %v760
    %v762 = vpop.f32.mrf.mxu0
    %v763 = vadd.f32 %v212, %v762
    %764 = vdwg.mxu0
    %765 = vmatprep.subr.bf16.mxu0 %v556
    %766 = vmatpush1.bf16.msra.mxu0 %v555
    %767 = vmatprep.subr.bf16.mxu0 %v554
    %768 = vmatpush1.bf16.msra.mxu0 %v553
    %769 = vmatprep.subr.bf16.mxu0 %v552
    %770 = vmatpush1.bf16.msra.mxu0 %v551
    %771 = vmatprep.subr.bf16.mxu0 %v550
    %772 = vmatpush1.bf16.msra.mxu0 %v549
    %773 = vmatprep.subr.bf16.mxu0 %v548
    %774 = vmatpush1.bf16.msra.mxu0 %v547
    %775 = vmatprep.subr.bf16.mxu0 %v546
    %776 = vmatpush1.bf16.msra.mxu0 %v545
    %777 = vmatprep.subr.bf16.mxu0 %v544
    %778 = vmatpush1.bf16.msra.mxu0 %v543
    %779 = vmatprep.subr.bf16.mxu0 %v542
    %780 = vmatpush1.bf16.msra.mxu0 %v541
    %781 = vmatprep.subr.bf16.mxu0 %v572
    %782 = vmatpush2.bf16.msra.mxu0 %v571
    %783 = vmatprep.subr.bf16.mxu0 %v570
    %784 = vmatpush2.bf16.msra.mxu0 %v569
    %785 = vmatprep.subr.bf16.mxu0 %v568
    %786 = vmatpush2.bf16.msra.mxu0 %v567
    %787 = vmatprep.subr.bf16.mxu0 %v566
    %788 = vmatpush2.bf16.msra.mxu0 %v565
    %789 = vmatprep.subr.bf16.mxu0 %v564
    %790 = vmatpush2.bf16.msra.mxu0 %v563
    %791 = vmatprep.subr.bf16.mxu0 %v562
    %792 = vmatpush2.bf16.msra.mxu0 %v561
    %793 = vmatprep.subr.bf16.mxu0 %v560
    %794 = vmatpush2.bf16.msra.mxu0 %v559
    %795 = vmatprep.subr.bf16.mxu0 %v558
    %796 = vmatpush2.bf16.msra.mxu0 %v557
    %797 = vmatprep.mubr.bf16.mxu0 %v94
    %798 = vmatmul.mubr.bf16.gmra.mxu0 %v93
    %v799 = vpop.f32.mrf.mxu0
    %v800 = vadd.f32 %v747, %v799
    %v801 = vpop.f32.mrf.mxu0
    %v802 = vadd.f32 %v749, %v801
    %v803 = vpop.f32.mrf.mxu0
    %v804 = vadd.f32 %v751, %v803
    %v805 = vpop.f32.mrf.mxu0
    %v806 = vadd.f32 %v753, %v805
    %807 = vmatprep.mubr.bf16.mxu0 %v101
    %808 = vmatmul.mubr.bf16.gmra.mxu0 %v100
    %v809 = vpop.f32.mrf.mxu0
    %v810 = vadd.f32 %v757, %v809
    %v811 = vpop.f32.mrf.mxu0
    %v812 = vadd.f32 %v759, %v811
    %v813 = vpop.f32.mrf.mxu0
    %v814 = vadd.f32 %v761, %v813
    %v815 = vpop.f32.mrf.mxu0
    %v816 = vadd.f32 %v763, %v815
    %817 = vdwg.mxu0
    %818 = vmatprep.subr.bf16.mxu0 %v588
    %819 = vmatpush1.bf16.msra.mxu0 %v587
    %820 = vmatprep.subr.bf16.mxu0 %v586
    %821 = vmatpush1.bf16.msra.mxu0 %v585
    %822 = vmatprep.subr.bf16.mxu0 %v584
    %823 = vmatpush1.bf16.msra.mxu0 %v583
    %824 = vmatprep.subr.bf16.mxu0 %v582
    %825 = vmatpush1.bf16.msra.mxu0 %v581
    %826 = vmatprep.subr.bf16.mxu0 %v580
    %827 = vmatpush1.bf16.msra.mxu0 %v579
    %828 = vmatprep.subr.bf16.mxu0 %v578
    %829 = vmatpush1.bf16.msra.mxu0 %v577
    %830 = vmatprep.subr.bf16.mxu0 %v576
    %831 = vmatpush1.bf16.msra.mxu0 %v575
    %832 = vmatprep.subr.bf16.mxu0 %v574
    %833 = vmatpush1.bf16.msra.mxu0 %v573
    %834 = vmatprep.subr.bf16.mxu0 %v604
    %835 = vmatpush2.bf16.msra.mxu0 %v603
    %836 = vmatprep.subr.bf16.mxu0 %v602
    %837 = vmatpush2.bf16.msra.mxu0 %v601
    %838 = vmatprep.subr.bf16.mxu0 %v600
    %839 = vmatpush2.bf16.msra.mxu0 %v599
    %840 = vmatprep.subr.bf16.mxu0 %v598
    %841 = vmatpush2.bf16.msra.mxu0 %v597
    %842 = vmatprep.subr.bf16.mxu0 %v596
    %843 = vmatpush2.bf16.msra.mxu0 %v595
    %844 = vmatprep.subr.bf16.mxu0 %v594
    %845 = vmatpush2.bf16.msra.mxu0 %v593
    %846 = vmatprep.subr.bf16.mxu0 %v592
    %847 = vmatpush2.bf16.msra.mxu0 %v591
    %848 = vmatprep.subr.bf16.mxu0 %v590
    %849 = vmatpush2.bf16.msra.mxu0 %v589
    %850 = vmatprep.mubr.bf16.mxu0 %v96
    %851 = vmatmul.mubr.bf16.gmra.mxu0 %v95
    %v852 = vpop.f32.mrf.mxu0
    %v853 = vadd.f32 %v800, %v852
    %v854 = vpop.f32.mrf.mxu0
    %v855 = vadd.f32 %v802, %v854
    %v856 = vpop.f32.mrf.mxu0
    %v857 = vadd.f32 %v804, %v856
    %v858 = vpop.f32.mrf.mxu0
    %v859 = vadd.f32 %v806, %v858
    %860 = vmatprep.mubr.bf16.mxu0 %v103
    %861 = vmatmul.mubr.bf16.gmra.mxu0 %v102
    %v862 = vpop.f32.mrf.mxu0
    %v863 = vadd.f32 %v810, %v862
    %v864 = vpop.f32.mrf.mxu0
    %v865 = vadd.f32 %v812, %v864
    %v866 = vpop.f32.mrf.mxu0
    %v867 = vadd.f32 %v814, %v866
    %v868 = vpop.f32.mrf.mxu0
    %v869 = vadd.f32 %v816, %v868
    %870 = vdwg.mxu0
    %871 = vmatprep.subr.bf16.mxu0 0
    %872 = vmatpush1.bf16.msra.mxu0 0
    %873 = vmatprep.subr.bf16.mxu0 0
    %874 = vmatpush1.bf16.msra.mxu0 0
    %875 = vmatprep.subr.bf16.mxu0 0
    %876 = vmatpush1.bf16.msra.mxu0 0
    %877 = vmatprep.subr.bf16.mxu0 0
    %878 = vmatpush1.bf16.msra.mxu0 0
    %879 = vmatprep.subr.bf16.mxu0 0
    %880 = vmatpush1.bf16.msra.mxu0 0
    %881 = vmatprep.subr.bf16.mxu0 0
    %882 = vmatpush1.bf16.msra.mxu0 0
    %883 = vmatprep.subr.bf16.mxu0 0
    %884 = vmatpush1.bf16.msra.mxu0 0
    %885 = vmatprep.subr.bf16.mxu0 %v606
    %886 = vmatpush1.bf16.msra.mxu0 %v605
    %887 = vmatprep.subr.bf16.mxu0 0
    %888 = vmatpush2.bf16.msra.mxu0 0
    %889 = vmatprep.subr.bf16.mxu0 0
    %890 = vmatpush2.bf16.msra.mxu0 0
    %891 = vmatprep.subr.bf16.mxu0 0
    %892 = vmatpush2.bf16.msra.mxu0 0
    %893 = vmatprep.subr.bf16.mxu0 0
    %894 = vmatpush2.bf16.msra.mxu0 0
    %895 = vmatprep.subr.bf16.mxu0 0
    %896 = vmatpush2.bf16.msra.mxu0 0
    %897 = vmatprep.subr.bf16.mxu0 0
    %898 = vmatpush2.bf16.msra.mxu0 0
    %899 = vmatprep.subr.bf16.mxu0 0
    %900 = vmatpush2.bf16.msra.mxu0 0
    %901 = vmatprep.subr.bf16.mxu0 0
    %902 = vmatpush2.bf16.msra.mxu0 0
    %903 = vmatprep.mubr.bf16.mxu0 0
    %904 = vmatmul.mubr.bf16.gmra.mxu0 %v707
    %v905 = vpop.f32.mrf.mxu0
    %v906 = vadd.f32 %v853, %v905
    %v907 = vpop.f32.mrf.mxu0
    %v908 = vadd.f32 %v855, %v907
    %v909 = vpop.f32.mrf.mxu0
    %v910 = vadd.f32 %v857, %v909
    %v911 = vpop.f32.mrf.mxu0
    %v912 = vadd.f32 %v859, %v911
    %913 = vmatprep.mubr.bf16.mxu0 0
    %914 = vmatmul.mubr.bf16.gmra.mxu0 %v710
    %v915 = vpop.f32.mrf.mxu0
    %v916 = vadd.f32 %v863, %v915
    %v917 = vpop.f32.mrf.mxu0
    %v918 = vadd.f32 %v865, %v917
    %v919 = vpop.f32.mrf.mxu0
    %v920 = vadd.f32 %v867, %v919
    %v921 = vpop.f32.mrf.mxu0
    %v922 = vadd.f32 %v869, %v921
    %923 = vdwg.mxu0
    %v924 = vxor.u32 %v906, 2147483648
    %v925 = vxor.u32 %v908, 2147483648
    %v926 = vxor.u32 %v910, 2147483648
    %v927 = vxor.u32 %v912, 2147483648
    %v928 = vxor.u32 %v916, 2147483648
    %v929 = vxor.u32 %v918, 2147483648
    %v930 = vxor.u32 %v920, 2147483648
    %v931 = vxor.u32 %v922, 2147483648
    %v932 = vmul.f32 %v924, 1.442695
    %v933 = vpow.pop %v932
    %v934 = vmul.f32 %v925, 1.442695
    %v935 = vpow.pop %v934
    %v936 = vmul.f32 %v926, 1.442695
    %v937 = vpow.pop %v936
    %v938 = vmul.f32 %v927, 1.442695
    %v939 = vpow.pop %v938
    %v940 = vmul.f32 %v928, 1.442695
    %v941 = vpow.pop %v940
    %v942 = vmul.f32 %v929, 1.442695
    %v943 = vpow.pop %v942
    %v944 = vmul.f32 %v930, 1.442695
    %v945 = vpow.pop %v944
    %v946 = vmul.f32 %v931, 1.442695
    %v947 = vpow.pop %v946
    %v948 = vadd.f32 %v933, 1.0
    %v949 = vadd.f32 %v935, 1.0
    %v950 = vadd.f32 %v937, 1.0
    %v951 = vadd.f32 %v939, 1.0
    %v952 = vadd.f32 %v941, 1.0
    %v953 = vadd.f32 %v943, 1.0
    %v954 = vadd.f32 %v945, 1.0
    %v955 = vadd.f32 %v947, 1.0
    %v956 = vrcp.pop %v948
    %v957 = vmul.f32 1.0, %v956
    %v958 = vrcp.pop %v949
    %v959 = vmul.f32 1.0, %v958
    %v960 = vrcp.pop %v950
    %v961 = vmul.f32 1.0, %v960
    %v962 = vrcp.pop %v951
    %v963 = vmul.f32 1.0, %v962
    %v964 = vrcp.pop %v952
    %v965 = vmul.f32 1.0, %v964
    %v966 = vrcp.pop %v953
    %v967 = vmul.f32 1.0, %v966
    %v968 = vrcp.pop %v954
    %v969 = vmul.f32 1.0, %v968
    %v970 = vrcp.pop %v955
    %v971 = vmul.f32 1.0, %v970
    %v972 = vpack.c.bf16 %v961, %v957
    %v973 = vpack.c.bf16 %v963, %v959
    %v974 = vpack.c.bf16 %v969, %v965
    %v975 = vpack.c.bf16 %v971, %v967
    %v976 = vld [vmem:[#allocation7] sm:$0xf]
    %v977 = vld [vmem:[#allocation7 + $0x4] sm:$0xf]
    %v978 = vld [vmem:[#allocation7 + $0x8] sm:$0xf]
    %v979 = vld [vmem:[#allocation7 + $0xc] sm:$0xf]
    %v980 = vld [vmem:[#allocation7 + $0x10] sm:$0xf]
    %v981 = vld [vmem:[#allocation7 + $0x14] sm:$0xf]
    %v982 = vld [vmem:[#allocation7 + $0x18] sm:$0xf]
    %v983 = vld [vmem:[#allocation7 + $0x1c] sm:$0xf]
    %v984 = vld [vmem:[#allocation7 + $0x20] sm:$0xf]
    %v985 = vld [vmem:[#allocation7 + $0x24] sm:$0xf]
    %v986 = vld [vmem:[#allocation7 + $0x28] sm:$0xf]
    %v987 = vld [vmem:[#allocation7 + $0x2c] sm:$0xf]
    %v988 = vld [vmem:[#allocation7 + $0x30] sm:$0xf]
    %v989 = vld [vmem:[#allocation7 + $0x34] sm:$0xf]
    %v990 = vld [vmem:[#allocation7 + $0x38] sm:$0xf]
    %v991 = vld [vmem:[#allocation7 + $0x3c] sm:$0xf]
    %v992 = vld [vmem:[#allocation7 + $0x40] sm:$0xf]
    %v993 = vld [vmem:[#allocation7 + $0x44] sm:$0xf]
    %v994 = vld [vmem:[#allocation7 + $0x48] sm:$0xf]
    %v995 = vld [vmem:[#allocation7 + $0x4c] sm:$0xf]
    %v996 = vld [vmem:[#allocation7 + $0x50] sm:$0xf]
    %v997 = vld [vmem:[#allocation7 + $0x54] sm:$0xf]
    %v998 = vld [vmem:[#allocation7 + $0x58] sm:$0xf]
    %v999 = vld [vmem:[#allocation7 + $0x5c] sm:$0xf]
    %v1000 = vld [vmem:[#allocation7 + $0x60] sm:$0xf]
    %v1001 = vld [vmem:[#allocation7 + $0x64] sm:$0xf]
    %v1002 = vld [vmem:[#allocation7 + $0x68] sm:$0xf]
    %v1003 = vld [vmem:[#allocation7 + $0x6c] sm:$0xf]
    %v1004 = vld [vmem:[#allocation7 + $0x70] sm:$0xf]
    %v1005 = vld [vmem:[#allocation7 + $0x74] sm:$0xf]
    %v1006 = vld [vmem:[#allocation7 + $0x78] sm:$0xf]
    %v1007 = vld [vmem:[#allocation7 + $0x7c] sm:$0xf]
    %v1008 = vld [vmem:[%s4] sm:$0x1]
    %v1010 = vlaneseq
    %v1011 = vshrl.u32 %v1010, 7
    %v1012 = vsub.s32 0, %v1011
    %v1013 = vrot.slane %v1008, %v1012
    %v1047 = vunpack.c.l.b16 %v976
    %v1048 = vunpack.c.l.b16 %v977
    %v1049 = vunpack.c.l.b16 %v978
    %v1050 = vunpack.c.l.b16 %v979
    %v1051 = vunpack.c.l.b16 %v980
    %v1052 = vunpack.c.l.b16 %v981
    %v1053 = vunpack.c.l.b16 %v982
    %v1054 = vunpack.c.l.b16 %v983
    %v1055 = vunpack.c.l.b16 %v984
    %v1056 = vunpack.c.l.b16 %v985
    %v1057 = vunpack.c.l.b16 %v986
    %v1058 = vunpack.c.l.b16 %v987
    %v1059 = vunpack.c.l.b16 %v988
    %v1060 = vunpack.c.l.b16 %v989
    %v1061 = vunpack.c.l.b16 %v990
    %v1062 = vunpack.c.l.b16 %v991
    %v1063 = vunpack.c.l.b16 %v992
    %v1064 = vunpack.c.l.b16 %v993
    %v1065 = vunpack.c.l.b16 %v994
    %v1066 = vunpack.c.l.b16 %v995
    %v1067 = vunpack.c.l.b16 %v996
    %v1068 = vunpack.c.l.b16 %v997
    %v1069 = vunpack.c.l.b16 %v998
    %v1070 = vunpack.c.l.b16 %v999
    %v1071 = vunpack.c.l.b16 %v1000
    %v1072 = vunpack.c.l.b16 %v1001
    %v1073 = vunpack.c.l.b16 %v1002
    %v1074 = vunpack.c.l.b16 %v1003
    %v1075 = vunpack.c.l.b16 %v1004
    %v1076 = vunpack.c.l.b16 %v1005
    %v1077 = vunpack.c.l.b16 %v1006
    %v1078 = vunpack.c.l.b16 %v1007
    %v1079 = vpack.c.b16 %v1048, %v1047
    %v1080 = vpack.c.b16 %v1050, %v1049
    %v1081 = vpack.c.b16 %v1052, %v1051
    %v1082 = vpack.c.b16 %v1054, %v1053
    %v1083 = vpack.c.b16 %v1056, %v1055
    %v1084 = vpack.c.b16 %v1058, %v1057
    %v1085 = vpack.c.b16 %v1060, %v1059
    %v1086 = vpack.c.b16 %v1062, %v1061
    %v1087 = vpack.c.b16 %v1064, %v1063
    %v1088 = vpack.c.b16 %v1066, %v1065
    %v1089 = vpack.c.b16 %v1068, %v1067
    %v1090 = vpack.c.b16 %v1070, %v1069
    %v1091 = vpack.c.b16 %v1072, %v1071
    %v1092 = vpack.c.b16 %v1074, %v1073
    %v1093 = vpack.c.b16 %v1076, %v1075
    %v1094 = vpack.c.b16 %v1078, %v1077
    %1111 = vmatprep.subr.bf16.mxu0 0
    %1112 = vmatpush1.bf16.msra.mxu0 %v1086
    %1113 = vmatprep.subr.bf16.mxu0 0
    %1114 = vmatpush1.bf16.msra.mxu0 %v1085
    %1115 = vmatprep.subr.bf16.mxu0 0
    %1116 = vmatpush1.bf16.msra.mxu0 %v1084
    %1117 = vmatprep.subr.bf16.mxu0 0
    %1118 = vmatpush1.bf16.msra.mxu0 %v1083
    %1119 = vmatprep.subr.bf16.mxu0 0
    %1120 = vmatpush1.bf16.msra.mxu0 %v1082
    %1121 = vmatprep.subr.bf16.mxu0 0
    %1122 = vmatpush1.bf16.msra.mxu0 %v1081
    %1123 = vmatprep.subr.bf16.mxu0 0
    %1124 = vmatpush1.bf16.msra.mxu0 %v1080
    %1125 = vmatprep.subr.bf16.mxu0 0
    %1126 = vmatpush1.bf16.msra.mxu0 %v1079
    %1127 = vmatprep.subr.bf16.mxu0 0
    %1128 = vmatpush2.bf16.msra.mxu0 %v1094
    %1129 = vmatprep.subr.bf16.mxu0 0
    %1130 = vmatpush2.bf16.msra.mxu0 %v1093
    %1131 = vmatprep.subr.bf16.mxu0 0
    %1132 = vmatpush2.bf16.msra.mxu0 %v1092
    %1133 = vmatprep.subr.bf16.mxu0 0
    %1134 = vmatpush2.bf16.msra.mxu0 %v1091
    %1135 = vmatprep.subr.bf16.mxu0 0
    %1136 = vmatpush2.bf16.msra.mxu0 %v1090
    %1137 = vmatprep.subr.bf16.mxu0 0
    %1138 = vmatpush2.bf16.msra.mxu0 %v1089
    %1139 = vmatprep.subr.bf16.mxu0 0
    %1140 = vmatpush2.bf16.msra.mxu0 %v1088
    %1141 = vmatprep.subr.bf16.mxu0 0
    %1142 = vmatpush2.bf16.msra.mxu0 %v1087
    %1143 = vmatprep.mubr.bf16.mxu0 %v973
    %1144 = vmatmul.mubr.bf16.gmra.mxu0 %v972
    %v1145 = vpop.f32.mrf.mxu0
    %v1146 = vadd.f32 %v1013, %v1145
    %v1147 = vpop.f32.mrf.mxu0
    %v1148 = vpop.f32.mrf.mxu0
    %v1149 = vadd.f32 %v1013, %v1148
    %v1150 = vpop.f32.mrf.mxu0
    %1151 = vmatprep.mubr.bf16.mxu0 %v975
    %1152 = vmatmul.mubr.bf16.gmra.mxu0 %v974
    %v1153 = vpop.f32.mrf.mxu0
    %v1154 = vadd.f32 %v1013, %v1153
    %v1155 = vpop.f32.mrf.mxu0
    %v1156 = vpop.f32.mrf.mxu0
    %v1157 = vadd.f32 %v1013, %v1156
    %v1158 = vpop.f32.mrf.mxu0
    %1159 = vdwg.mxu0
    %1160 = vmax.xlane.f32.xlu0 %v1146
    %v1161 = vpop.xlane.xlu0 %1160
    %1162 = vmax.xlane.f32.xlu0 %v1149
    %v1163 = vpop.xlane.xlu0 %1162
    %1164 = vmax.xlane.f32.xlu0 %v1154
    %v1165 = vpop.xlane.xlu0 %1164
    %1166 = vmax.xlane.f32.xlu0 %v1157
    %v1167 = vpop.xlane.xlu0 %1166
    %v1168 = vsub.f32 %v1146, %v1161
    %v1169 = vsub.f32 %v1149, %v1163
    %v1170 = vsub.f32 %v1154, %v1165
    %v1171 = vsub.f32 %v1157, %v1167
    %v1172 = vmul.f32 %v1168, 1.442695
    %v1173 = vpow.pop %v1172
    %v1174 = vmul.f32 %v1169, 1.442695
    %v1175 = vpow.pop %v1174
    %v1176 = vmul.f32 %v1170, 1.442695
    %v1177 = vpow.pop %v1176
    %v1178 = vmul.f32 %v1171, 1.442695
    %v1179 = vpow.pop %v1178
    %1180 = vadd.xlane.f32.xlu0 %v1173
    %v1181 = vpop.xlane.xlu0 %1180
    %1182 = vadd.xlane.f32.xlu0 %v1175
    %v1183 = vpop.xlane.xlu0 %1182
    %1184 = vadd.xlane.f32.xlu0 %v1177
    %v1185 = vpop.xlane.xlu0 %1184
    %1186 = vadd.xlane.f32.xlu0 %v1179
    %v1187 = vpop.xlane.xlu0 %1186
    %v1188 = vrcp.pop %v1181
    %v1189 = vmul.f32 %v1173, %v1188
    %v1190 = vrcp.pop %v1183
    %v1191 = vmul.f32 %v1175, %v1190
    %v1192 = vrcp.pop %v1185
    %v1193 = vmul.f32 %v1177, %v1192
    %v1194 = vrcp.pop %v1187
    %v1195 = vmul.f32 %v1179, %v1194
    %1196 = vst [vmem:[#allocation8] sm:$0xff] %v1189
    %1197 = vst [vmem:[#allocation8 + $0x8] sm:$0xff] %v1191
    %1198 = vst [vmem:[#allocation8 + $0x10] sm:$0xff] %v1193
    %1199 = vst [vmem:[#allocation8 + $0x18] sm:$0xff] %v1195
    // Predicated region
    $region34: #{tpu_custom_call.1} parent=1 // pred_check
      _
    $region35: #{tpu_custom_call.1} parent=1 // pred_check_branch
      %1201 = sbr.rel (0) target = $region37
    $region36: #{tpu_custom_call.1} parent=1 // pred_region
      %s1203 = ssub.s32 512, 512
      %1204 = vsyncadd [#allocation4], %s1203
      %s1205 = sshll.u32 [#allocation8], 4
      %s1206 = int_to_ptr.vmem [resolvable:$true] %s1205
      %1211 = dma.vmem_to_hbm [thread:$0]  %s1206, 512, %s5, [#allocation4], 128, 128, 8
    $region37: #{tpu_custom_call.1} parent=1 // pred_fallthru
      _
    // Predicated region
    $region38: #{tpu_custom_call.1} parent=1 // pred_check
      _
    $region39: #{tpu_custom_call.1} parent=1 // pred_check_branch
      %1213 = sbr.rel (0) target = $region41
    $region40: #{tpu_custom_call.1} parent=1 // pred_region
      %1214 = dma.done [#allocation4], 512
    $region41: #{tpu_custom_call.1} parent=1 // pred_fallthru
      _
    %1215 = vsyncpa [#allocation3], 1
    %1216 = vsyncpa [#allocation6], 1
    %1217 = vsyncpa [#allocation4], 1

</llo_original>
